<compile_context>
chip_gen: v5e
topology: v5e:2x2
jax: 0.10.0
libtpu: 0.0.40
codegen_flags: <defaults>
</compile_context>

<pallas_src>
import math

import jax
import jax.numpy as jnp
from jax.experimental import pallas as pl
from jax.experimental.pallas import tpu as pltpu

LANE = 128     # TPU lane width: hidden (inter-layer) feature dims are 128-dense
SUBLANE = 8    # f32 sublane packing: batch tiles / K dims are multiples of 8


def _round_up(x, m):
    return (x + m - 1) // m * m


def actor_mlp_kernel(x_ref, w1_ref, w2_ref, w3_ref, b_ref, o_ref):
    d_h = w1_ref.shape[1]
    d_out = w3_ref.shape[1]
    b = b_ref[...]                                   # (3, max(d_h, d_out)) f32

    x = x_ref[...].astype(w1_ref.dtype)              # f32 -> weight dtype (VPU cast)
    h1 = jnp.dot(x, w1_ref[...], preferred_element_type=jnp.float32) + b[0:1, :d_h]
    h1 = jnp.maximum(h1, 0.0)                        # F.relu on the f32 accumulator
    h2 = (jnp.dot(h1.astype(w2_ref.dtype), w2_ref[...],
                  preferred_element_type=jnp.float32) + b[1:2, :d_h])
    h2 = jnp.maximum(h2, 0.0)                        # F.relu on the f32 accumulator
    a = (jnp.dot(h2.astype(w3_ref.dtype), w3_ref[...],
                 preferred_element_type=jnp.float32) + b[2:3, :d_out])
    o_ref[...] = a.astype(o_ref.dtype)               # narrow, exact-width store


def actor_forward(state, params, *, tb_max=4096):
    """state: (B, 1, n_input) or (B, n_input).  Returns (B, n_output) float32."""
    if state.ndim == 3:
        state = jnp.squeeze(state, axis=1)           # torch.squeeze(state, 1)
    x = state.astype(jnp.float32)                    # .float()

    w1, w2, w3, b = params["w1"], params["w2"], params["w3"], params["b"]
    n_in_pad, d_h = w1.shape                         # K dim already rounded to 8
    n_output = w3.shape[1]                           # true output width (no lane pad)
    bw = b.shape[1]

    B = x.shape[0]
    # Divisor-aware batch tiling; force an even number (>=2) of grid steps when B
    # is big enough so v7x's second TensorCore gets work under "parallel".
    tb_max = max(SUBLANE, _round_up(tb_max, SUBLANE))
    grid_n = pl.cdiv(B, tb_max)
    if B >= 2 * SUBLANE and grid_n % 2:
        grid_n += 1
    tb = _round_up(pl.cdiv(B, grid_n), SUBLANE)      # batch tile, multiple of 8
    b_pad = grid_n * tb

    # Single pad pass: batch to the tile multiple, features only to a multiple of 8
    # (usually a no-op) -- NOT to 128.
    pad_b = b_pad - B
    pad_f = n_in_pad - x.shape[1]
    if pad_b or pad_f:
        x = jnp.pad(x, ((0, pad_b), (0, pad_f)))

    wbytes = (w1.size * w1.dtype.itemsize + w2.size * w2.dtype.itemsize
              + w3.size * w3.dtype.itemsize + b.size * 4)
    flops = 2 * b_pad * (n_in_pad * d_h + d_h * d_h + d_h * n_output)
    bytes_accessed = b_pad * n_in_pad * 4 + b_pad * n_output * 4 + wbytes

    out = pl.pallas_call(
        actor_mlp_kernel,
        out_shape=jax.ShapeDtypeStruct((b_pad, n_output), jnp.float32),
        grid=(grid_n,),
        in_specs=[
            pl.BlockSpec((tb, n_in_pad), lambda i: (i, 0)),   # batch tile of x
            pl.BlockSpec((n_in_pad, d_h), lambda i: (0, 0)),  # weights: block-invariant
            pl.BlockSpec((d_h, d_h), lambda i: (0, 0)),       #   (Pallas won't re-DMA)
            pl.BlockSpec((d_h, n_output), lambda i: (0, 0)),
            pl.BlockSpec((3, bw), lambda i: (0, 0)),          # packed biases (1 DMA)
        ],
        out_specs=pl.BlockSpec((tb, n_output), lambda i: (i, 0)),
        compiler_params=pltpu.CompilerParams(
            dimension_semantics=("parallel",),
            # tb=4096 footprint (x + out double buffers + 2x (tb,128) f32
            # intermediates + resident weights) is ~15 MiB; 32 MiB is safe on
            # v5e/v6e/v7x and above v5e's 16 MiB scoped default.
            vmem_limit_bytes=32 * 1024 * 1024,
        ),
        cost_estimate=pl.CostEstimate(
            flops=flops, transcendentals=0, bytes_accessed=bytes_accessed),
    )(x, w1, w2, w3, b)

    return out[:B]                                   # tiny (<= B x n_output) slice


def _xavier_uniform(key, fan_in, fan_out, gain):
    bound = gain * math.sqrt(6.0 / (fan_in + fan_out))
    # stored (in, out) -> kernel computes x @ W
    return jax.random.uniform(key, (fan_in, fan_out), jnp.float32, -bound, bound)


def _linear_bias(key, fan_in, fan_out):
    # PyTorch nn.Linear default bias init: U(-1/sqrt(fan_in), 1/sqrt(fan_in))
    bound = 1.0 / math.sqrt(fan_in)
    return jax.random.uniform(key, (fan_out,), jnp.float32, -bound, bound)


def init_actor_params(key, n_input, n_features, n_output, dtype=jnp.bfloat16):
    ks = jax.random.split(key, 6)
    gain_relu = math.sqrt(2.0)   # nn.init.calculate_gain('relu')
    gain_lin = 1.0               # nn.init.calculate_gain('linear')
    w1 = _xavier_uniform(ks[0], n_input, n_features, gain_relu)
    b1 = _linear_bias(ks[1], n_input, n_features)
    w2 = _xavier_uniform(ks[2], n_features, n_features, gain_relu)
    b2 = _linear_bias(ks[3], n_features, n_features)
    w3 = _xavier_uniform(ks[4], n_features, n_output, gain_lin)
    b3 = _linear_bias(ks[5], n_features, n_output)

    # Input K dim: sublane-align only.  Hidden dims: lane-pad to 128 so the
    # inter-layer activations stay vreg-dense.  Output dim: NOT padded.
    n_in_pad = _round_up(n_input, SUBLANE)
    d_h = _round_up(n_features, LANE)
    bw = max(d_h, n_output)

    # Padding is zeros, so the padded math equals the unpadded computation.
    w1_p = jnp.zeros((n_in_pad, d_h), dtype).at[:n_input, :n_features].set(w1.astype(dtype))
    w2_p = jnp.zeros((d_h, d_h), dtype).at[:n_features, :n_features].set(w2.astype(dtype))
    w3_p = jnp.zeros((d_h, n_output), dtype).at[:n_features, :].set(w3.astype(dtype))
    b_p = jnp.zeros((3, bw), jnp.float32)
    b_p = b_p.at[0, :n_features].set(b1)
    b_p = b_p.at[1, :n_features].set(b2)
    b_p = b_p.at[2, :n_output].set(b3)

    return {
        "w1": w1_p, "w2": w2_p, "w3": w3_p, "b": b_p,
        "n_input": n_input, "n_output": n_output,
        # unpadded f32 copies, used only by the pure-JAX reference
        "raw": (w1, b1, w2, b2, w3, b3),
    }


def reference_forward(state, params):
    if state.ndim == 3:
        state = jnp.squeeze(state, axis=1)
    w1, b1, w2, b2, w3, b3 = params["raw"]
    x = state.astype(jnp.float32)
    h1 = jnp.maximum(x @ w1 + b1, 0.0)
    h2 = jnp.maximum(h1 @ w2 + b2, 0.0)
    return h2 @ w3 + b3


if __name__ == "__main__":
    key = jax.random.PRNGKey(0)
    k_state, k_params, k_state2 = jax.random.split(key, 3)

    batch = 10        # deliberately not a tile multiple: exercises batch pad+slice
    n_input = 32      # input_shape[-1]
    n_features = 64
    n_output = 8      # output_shape[0]

    # state shaped like the torch module expects: (batch, 1, n_input)
    state = jax.random.normal(k_state, (batch, 1, n_input), jnp.float32)

    # --- exact f32 path (matches the torch `.float()` semantics) -----------------
    params_f32 = init_actor_params(k_params, n_input, n_features, n_output,
                                   dtype=jnp.float32)
    # Tiny tb_max so this toy size still runs a 2-step batch grid (pipelined path).
    out = jax.block_until_ready(actor_forward(state, params_f32, tb_max=8))
    ref = reference_forward(state, params_f32)
    assert out.shape == (batch, n_output), out.shape
    assert jnp.allclose(out, ref, atol=1e-3, rtol=1e-3), \
        float(jnp.max(jnp.abs(out - ref)))

    # --- bf16-weight path (default; halves weight/activation VMEM traffic) -------
    params_bf16 = init_actor_params(k_params, n_input, n_features, n_output,
                                    dtype=jnp.bfloat16)
    batch2 = 64
    state2 = jax.random.normal(k_state2, (batch2, 1, n_input), jnp.float32)
    # Default tb_max: exercises the even/floor-of-2 grid (1 -> 2 steps for v7x).
    out2 = jax.block_until_ready(actor_forward(state2, params_bf16))
    ref2 = reference_forward(state2, params_bf16)
    assert out2.shape == (batch2, n_output), out2.shape
    assert jnp.allclose(out2, ref2, atol=5e-2, rtol=5e-2), \
        float(jnp.max(jnp.abs(out2 - ref2)))

    print("KERNEL_OK")
</pallas_src>

<mosaic_0001>
module attributes {stable_mosaic.version = 11 : i64} {
  func.func @actor_mlp_kernel(%arg0: i32, %arg1: memref<8x32xf32, #tpu.memory_space<vmem>>, %arg2: memref<32x128xf32, #tpu.memory_space<vmem>>, %arg3: memref<128x128xf32, #tpu.memory_space<vmem>>, %arg4: memref<128x8xf32, #tpu.memory_space<vmem>>, %arg5: memref<3x128xf32, #tpu.memory_space<vmem>>, %arg6: memref<8x8xf32, #tpu.memory_space<vmem>>) attributes {dimension_semantics = [#tpu.dimension_semantics<parallel>], iteration_bounds = array<i64: 2>, scalar_prefetch = 0 : i64, scratch_operands = 0 : i64, tpu.core_type = #tpu.core_type<tc>, window_params = [{transform_indices = @transform_0, window_bounds = array<i64: 8, 32>}, {pipeline_mode = #tpu.pipeline_mode<synchronous>, transform_indices = @transform_1, window_bounds = array<i64: 32, 128>}, {pipeline_mode = #tpu.pipeline_mode<synchronous>, transform_indices = @transform_2, window_bounds = array<i64: 128, 128>}, {pipeline_mode = #tpu.pipeline_mode<synchronous>, transform_indices = @transform_3, window_bounds = array<i64: 128, 8>}, {pipeline_mode = #tpu.pipeline_mode<synchronous>, transform_indices = @transform_4, window_bounds = array<i64: 3, 128>}, {transform_indices = @transform_5, window_bounds = array<i64: 8, 8>}]} {
    %c0 = arith.constant 0 : index
    %c0_0 = arith.constant 0 : index
    %0 = vector.load %arg5[%c0, %c0_0] : memref<3x128xf32, #tpu.memory_space<vmem>>, vector<3x128xf32>
    %c0_1 = arith.constant 0 : index
    %c0_2 = arith.constant 0 : index
    %1 = vector.load %arg1[%c0_1, %c0_2] : memref<8x32xf32, #tpu.memory_space<vmem>>, vector<8x32xf32>
    %c0_3 = arith.constant 0 : index
    %c0_4 = arith.constant 0 : index
    %2 = vector.load %arg2[%c0_3, %c0_4] : memref<32x128xf32, #tpu.memory_space<vmem>>, vector<32x128xf32>
    %cst = arith.constant dense<0.000000e+00> : vector<8x128xf32>
    %3 = tpu.matmul %1, %2, %cst {dimension_numbers = #tpu.dot_dimension_numbers<[1], [0], [0], [1], [0, 0, 1, 1], [], []>} : vector<8x32xf32>, vector<32x128xf32>, vector<8x128xf32> -> vector<8x128xf32>
    %4 = vector.extract_strided_slice %0 {offsets = [0, 0], sizes = [1, 128], strides = [1, 1]} : vector<3x128xf32> to vector<1x128xf32>
    %5 = vector.broadcast %4 : vector<1x128xf32> to vector<8x128xf32>
    %6 = arith.addf %3, %5 : vector<8x128xf32>
    %cst_5 = arith.constant 0.000000e+00 : f32
    %7 = vector.broadcast %cst_5 : f32 to vector<8x128xf32>
    %8 = arith.maximumf %6, %7 : vector<8x128xf32>
    %c0_6 = arith.constant 0 : index
    %c0_7 = arith.constant 0 : index
    %9 = vector.load %arg3[%c0_6, %c0_7] : memref<128x128xf32, #tpu.memory_space<vmem>>, vector<128x128xf32>
    %cst_8 = arith.constant dense<0.000000e+00> : vector<8x128xf32>
    %10 = tpu.matmul %8, %9, %cst_8 {dimension_numbers = #tpu.dot_dimension_numbers<[1], [0], [0], [1], [0, 0, 1, 1], [], []>} : vector<8x128xf32>, vector<128x128xf32>, vector<8x128xf32> -> vector<8x128xf32>
    %11 = vector.extract_strided_slice %0 {offsets = [1, 0], sizes = [1, 128], strides = [1, 1]} : vector<3x128xf32> to vector<1x128xf32>
    %12 = vector.broadcast %11 : vector<1x128xf32> to vector<8x128xf32>
    %13 = arith.addf %10, %12 : vector<8x128xf32>
    %cst_9 = arith.constant 0.000000e+00 : f32
    %14 = vector.broadcast %cst_9 : f32 to vector<8x128xf32>
    %15 = arith.maximumf %13, %14 : vector<8x128xf32>
    %c0_10 = arith.constant 0 : index
    %c0_11 = arith.constant 0 : index
    %16 = vector.load %arg4[%c0_10, %c0_11] : memref<128x8xf32, #tpu.memory_space<vmem>>, vector<128x8xf32>
    %cst_12 = arith.constant dense<0.000000e+00> : vector<8x8xf32>
    %17 = tpu.matmul %15, %16, %cst_12 {dimension_numbers = #tpu.dot_dimension_numbers<[1], [0], [0], [1], [0, 0, 1, 1], [], []>} : vector<8x128xf32>, vector<128x8xf32>, vector<8x8xf32> -> vector<8x8xf32>
    %18 = vector.extract_strided_slice %0 {offsets = [2, 0], sizes = [1, 8], strides = [1, 1]} : vector<3x128xf32> to vector<1x8xf32>
    %19 = vector.broadcast %18 : vector<1x8xf32> to vector<8x8xf32>
    %20 = arith.addf %17, %19 : vector<8x8xf32>
    %c0_13 = arith.constant 0 : index
    %c0_14 = arith.constant 0 : index
    %21 = vector.load %arg6[%c0_13, %c0_14] : memref<8x8xf32, #tpu.memory_space<vmem>>, vector<8x8xf32>
    tpu.vector_store %arg6[%c0_13, %c0_14], %20 {strides = array<i32>} : memref<8x8xf32, #tpu.memory_space<vmem>>, vector<8x8xf32>,
    return
  }
  func.func @transform_0(%arg0: i32) -> (i32, i32) {
    %c0_i32 = arith.constant 0 : i32
    %c0_i32_0 = arith.constant 0 : i32
    return %arg0, %c0_i32 : i32, i32
  }
  func.func @transform_1(%arg0: i32) -> (i32, i32) {
    %c0_i32 = arith.constant 0 : i32
    %c0_i32_0 = arith.constant 0 : i32
    %c0_i32_1 = arith.constant 0 : i32
    return %c0_i32, %c0_i32_0 : i32, i32
  }
  func.func @transform_2(%arg0: i32) -> (i32, i32) {
    %c0_i32 = arith.constant 0 : i32
    %c0_i32_0 = arith.constant 0 : i32
    %c0_i32_1 = arith.constant 0 : i32
    return %c0_i32, %c0_i32_0 : i32, i32
  }
  func.func @transform_3(%arg0: i32) -> (i32, i32) {
    %c0_i32 = arith.constant 0 : i32
    %c0_i32_0 = arith.constant 0 : i32
    %c0_i32_1 = arith.constant 0 : i32
    return %c0_i32, %c0_i32_0 : i32, i32
  }
  func.func @transform_4(%arg0: i32) -> (i32, i32) {
    %c0_i32 = arith.constant 0 : i32
    %c0_i32_0 = arith.constant 0 : i32
    %c0_i32_1 = arith.constant 0 : i32
    return %c0_i32, %c0_i32_0 : i32, i32
  }
  func.func @transform_5(%arg0: i32) -> (i32, i32) {
    %c0_i32 = arith.constant 0 : i32
    %c0_i32_0 = arith.constant 0 : i32
    return %arg0, %c0_i32 : i32, i32
  }
}

</mosaic_0001>

<llo_original>
// kernel: tpu_custom_call.1
$region0: #{tpu_custom_call.1}
  #allocation0 [shape = 'u32[]', space=smem, size = 0x4, offset = 0x4, fixed_abs, tag = 'smem constant byte address 0x4 - core index']
  #allocation1 [shape = 'u32[72,128]{1,0:T(1,128)}', space=vmem, size = 0x9000, scoped, tag = 'internal scratch']
  %s0 = inlined_call_operand.hbm [shape: f32[16,32], index: 0, kind: input, shape index: {}]
  %s1 = inlined_call_operand.hbm [shape: f32[32,128], index: 1, kind: input, shape index: {}]
  %s2 = inlined_call_operand.vmem [shape: f32[128,128], index: 2, kind: input, shape index: {}]
  %s3 = inlined_call_operand.vmem [shape: f32[128,8], index: 3, kind: input, shape index: {}]
  %s4 = inlined_call_operand.vmem [shape: f32[3,128], index: 4, kind: input, shape index: {}]
  %s5 = inlined_call_operand.vmem [shape: f32[16,8], index: 5, kind: output, shape index: {}]
  %s6 = sld [smem:[#allocation0]]
  $region61: #{tpu_custom_call.1} parent=0
    _
  %s8 = ssub.s32 1, %s6
  %s9 = scalar_select 0, %s8, %s6
  $region1: #{tpu_custom_call.1} parent=0
    #allocation2 [shape = 'u8[8192]{0}', space=vmem, size = 0x2000, scoped, tag = 'input window, operand 0']
    #allocation3 [shape = 's32[2]{0}', space=sflag, size = 0x8, scoped, tag = 'scoped memory for tpu_custom_call.1']
    #allocation4 [shape = 'u8[16384]{0}', space=vmem, size = 0x4000, scoped, tag = 'input window, operand 1, single buffered']
    #allocation5 [shape = 's32[1]{0}', space=sflag, size = 0x4, scoped, tag = 'scoped memory for tpu_custom_call.1']
    %10 = vsyncpa [#allocation3], 0
    %s11 = scalar_lea.sflag [#allocation3], 1
    %12 = vsyncpa %s11, 0
    %13 = vsyncpa [#allocation5], 0
    loop: start=0, step=1, limit=4
    $region2: #{tpu_custom_call.1} parent=1 // loop_pre_header
      _
    $region3: #{tpu_custom_call.1} parent=1 // loop_header
      %s15 = sphi 0, %s19
      %p16 = scmp.ge.s32.totalorder %s15, 4
      %s25 = sphi 0, %s27
      %s28 = sphi 0, %s25
      %s29 = sphi 0, %s28
      %s45 = sphi 0, %s29
      %s49 = sphi 0, %s49
      %s51 = sphi 0, %s49
      %s52 = sphi 0, %s51
      %s66 = sphi 0, %s52
      %s70 = sphi 0, %s70
      %s72 = sphi 0, %s70
      %s73 = sphi 0, %s72
      %s87 = sphi 0, %s73
      %s91 = sphi 0, %s91
      %s93 = sphi 0, %s91
      %s94 = sphi 0, %s93
      %s108 = sphi 0, %s94
      %s112 = sphi 0, %s112
      %s114 = sphi 0, %s112
      %s115 = sphi 0, %s114
      %s129 = sphi 0, %s115
      %s135 = sphi 0, %s137
      %s138 = sphi 0, %s135
      %s139 = sphi 0, %s138
      %s155 = sphi 0, %s139
    $region4: #{tpu_custom_call.1} parent=1 // loop_header_branch
      %18 = sbr.rel (%p16) target = $region8
    $region5: #{tpu_custom_call.1} parent=1 // loop_body
      %s20 = ssub.s32 %s15, 1
      %s21 = ssub.s32 %s15, 2
      %s22 = sadd.s32 %s15, 1
      %s23 = ssub.s32 %s15, %s22
      %p24 = scmp.eq.s32.totalorder %s23, 0
      %s26 = sadd.s32 %s25, 1
      %s27 = scalar_select %p24, %s25, %s26
      %p30 = pneg %p24
      %p31 = scmp.eq.s32.totalorder %s15, 1
      %p32 = por %p30, %p31
      %p33 = scmp.ne.s32.totalorder %s25, %s28
      %p34 = scmp.eq.s32.totalorder %s15, 0
      %p35 = por %p33, %p34
      %p36 = scmp.ne.s32.totalorder %s25, %s28
      %p37 = scmp.eq.s32.totalorder %s20, 1
      %p38 = por %p36, %p37
      %p39 = scmp.ne.s32.totalorder %s28, %s29
      %p40 = scmp.eq.s32.totalorder %s20, 0
      %p41 = por %p39, %p40
      %p42 = scmp.ne.s32.totalorder %s28, %s29
      %p43 = scmp.eq.s32.totalorder %s21, 1
      %p44 = por %p42, %p43
      %p46 = scmp.ne.s32.totalorder %s29, %s45
      %p47 = scmp.eq.s32.totalorder %s21, 0
      %p48 = por %p46, %p47
      %s50 = sadd.s32 %s49, 1
      %p53 = scmp.eq.s32.totalorder %s15, 1
      %p54 = scmp.ne.s32.totalorder %s49, %s51
      %p55 = scmp.eq.s32.totalorder %s15, 0
      %p56 = por %p54, %p55
      %p57 = scmp.ne.s32.totalorder %s49, %s51
      %p58 = scmp.eq.s32.totalorder %s20, 1
      %p59 = por %p57, %p58
      %p60 = scmp.ne.s32.totalorder %s51, %s52
      %p61 = scmp.eq.s32.totalorder %s20, 0
      %p62 = por %p60, %p61
      %p63 = scmp.ne.s32.totalorder %s51, %s52
      %p64 = scmp.eq.s32.totalorder %s21, 1
      %p65 = por %p63, %p64
      %p67 = scmp.ne.s32.totalorder %s52, %s66
      %p68 = scmp.eq.s32.totalorder %s21, 0
      %p69 = por %p67, %p68
      %s71 = sadd.s32 %s70, 1
      %p74 = scmp.eq.s32.totalorder %s15, 1
      %p75 = scmp.ne.s32.totalorder %s70, %s72
      %p76 = scmp.eq.s32.totalorder %s15, 0
      %p77 = por %p75, %p76
      %p78 = scmp.ne.s32.totalorder %s70, %s72
      %p79 = scmp.eq.s32.totalorder %s20, 1
      %p80 = por %p78, %p79
      %p81 = scmp.ne.s32.totalorder %s72, %s73
      %p82 = scmp.eq.s32.totalorder %s20, 0
      %p83 = por %p81, %p82
      %p84 = scmp.ne.s32.totalorder %s72, %s73
      %p85 = scmp.eq.s32.totalorder %s21, 1
      %p86 = por %p84, %p85
      %p88 = scmp.ne.s32.totalorder %s73, %s87
      %p89 = scmp.eq.s32.totalorder %s21, 0
      %p90 = por %p88, %p89
      %s92 = sadd.s32 %s91, 1
      %p95 = scmp.eq.s32.totalorder %s15, 1
      %p96 = scmp.ne.s32.totalorder %s91, %s93
      %p97 = scmp.eq.s32.totalorder %s15, 0
      %p98 = por %p96, %p97
      %p99 = scmp.ne.s32.totalorder %s91, %s93
      %p100 = scmp.eq.s32.totalorder %s20, 1
      %p101 = por %p99, %p100
      %p102 = scmp.ne.s32.totalorder %s93, %s94
      %p103 = scmp.eq.s32.totalorder %s20, 0
      %p104 = por %p102, %p103
      %p105 = scmp.ne.s32.totalorder %s93, %s94
      %p106 = scmp.eq.s32.totalorder %s21, 1
      %p107 = por %p105, %p106
      %p109 = scmp.ne.s32.totalorder %s94, %s108
      %p110 = scmp.eq.s32.totalorder %s21, 0
      %p111 = por %p109, %p110
      %s113 = sadd.s32 %s112, 1
      %p116 = scmp.eq.s32.totalorder %s15, 1
      %p117 = scmp.ne.s32.totalorder %s112, %s114
      %p118 = scmp.eq.s32.totalorder %s15, 0
      %p119 = por %p117, %p118
      %p120 = scmp.ne.s32.totalorder %s112, %s114
      %p121 = scmp.eq.s32.totalorder %s20, 1
      %p122 = por %p120, %p121
      %p123 = scmp.ne.s32.totalorder %s114, %s115
      %p124 = scmp.eq.s32.totalorder %s20, 0
      %p125 = por %p123, %p124
      %p126 = scmp.ne.s32.totalorder %s114, %s115
      %p127 = scmp.eq.s32.totalorder %s21, 1
      %p128 = por %p126, %p127
      %p130 = scmp.ne.s32.totalorder %s115, %s129
      %p131 = scmp.eq.s32.totalorder %s21, 0
      %p132 = por %p130, %p131
      %s133 = ssub.s32 %s15, %s22
      %p134 = scmp.eq.s32.totalorder %s133, 0
      %s136 = sadd.s32 %s135, 1
      %s137 = scalar_select %p134, %s135, %s136
      %p140 = pneg %p134
      %p141 = scmp.eq.s32.totalorder %s15, 1
      %p142 = por %p140, %p141
      %p143 = scmp.ne.s32.totalorder %s135, %s138
      %p144 = scmp.eq.s32.totalorder %s15, 0
      %p145 = por %p143, %p144
      %p146 = scmp.ne.s32.totalorder %s135, %s138
      %p147 = scmp.eq.s32.totalorder %s20, 1
      %p148 = por %p146, %p147
      %p149 = scmp.ne.s32.totalorder %s138, %s139
      %p150 = scmp.eq.s32.totalorder %s20, 0
      %p151 = por %p149, %p150
      %p152 = scmp.ne.s32.totalorder %s138, %s139
      %p153 = scmp.eq.s32.totalorder %s21, 1
      %p154 = por %p152, %p153
      %p156 = scmp.ne.s32.totalorder %s139, %s155
      %p157 = scmp.eq.s32.totalorder %s21, 0
      %p158 = por %p156, %p157
      %p159 = scmp.le.s32.totalorder 1, %s15
      %p160 = scmp.lt.s32.totalorder %s15, 3
      %p161 = pnand %p159, %p160
      %p162 = pneg %p161
      // Predicated region
      $region9: #{tpu_custom_call.1} parent=5 // pred_check
        _
      $region10: #{tpu_custom_call.1} parent=5 // pred_check_branch
        %164 = sbr.rel (%p161) target = $region12
      $region11: #{tpu_custom_call.1} parent=5 // pred_region
        %s165 = ssub.s32 %s15, 1
        // Predicated region
        $region13: #{tpu_custom_call.1} parent=11 // pred_check
          %p166 = pneg %p62
        $region14: #{tpu_custom_call.1} parent=11 // pred_check_branch
          %168 = sbr.rel (%p166) target = $region16
        $region15: #{tpu_custom_call.1} parent=11 // pred_region
          %170 = vsyncadd [#allocation5], 0
          %s171 = sshll.u32 %s1, 4
          %s172 = int_to_ptr.hbm [resolvable:$true] %s171
          %s173 = sshll.u32 [#allocation4], 4
          %s174 = int_to_ptr.vmem [resolvable:$true] %s173
          %179 = dma.hbm_to_vmem [thread:$0]  %s172, 512, %s174, [#allocation5], 128, 128, 8
        $region16: #{tpu_custom_call.1} parent=11 // pred_fallthru
          _
        // Predicated region
        $region17: #{tpu_custom_call.1} parent=11 // pred_check
          %p180 = pneg %p83
        $region18: #{tpu_custom_call.1} parent=11 // pred_check_branch
          %182 = sbr.rel (%p180) target = $region20
        $region19: #{tpu_custom_call.1} parent=11 // pred_region
          _
        $region20: #{tpu_custom_call.1} parent=11 // pred_fallthru
          _
        // Predicated region
        $region21: #{tpu_custom_call.1} parent=11 // pred_check
          %p183 = pneg %p104
        $region22: #{tpu_custom_call.1} parent=11 // pred_check_branch
          %185 = sbr.rel (%p183) target = $region24
        $region23: #{tpu_custom_call.1} parent=11 // pred_region
          _
        $region24: #{tpu_custom_call.1} parent=11 // pred_fallthru
          _
        // Predicated region
        $region25: #{tpu_custom_call.1} parent=11 // pred_check
          %p186 = pneg %p125
        $region26: #{tpu_custom_call.1} parent=11 // pred_check_branch
          %188 = sbr.rel (%p186) target = $region28
        $region27: #{tpu_custom_call.1} parent=11 // pred_region
          _
        $region28: #{tpu_custom_call.1} parent=11 // pred_fallthru
          _
      $region12: #{tpu_custom_call.1} parent=5 // pred_fallthru
        _
      %p189 = scmp.lt.s32.totalorder %s15, 2
      // Predicated region
      $region29: #{tpu_custom_call.1} parent=5 // pred_check
        %p190 = pneg %p189
      $region30: #{tpu_custom_call.1} parent=5 // pred_check_branch
        %192 = sbr.rel (%p190) target = $region32
      $region31: #{tpu_custom_call.1} parent=5 // pred_region
        // Predicated region
        $region33: #{tpu_custom_call.1} parent=31 // pred_check
          %p193 = pneg %p35
        $region34: #{tpu_custom_call.1} parent=31 // pred_check_branch
          %195 = sbr.rel (%p193) target = $region36
        $region35: #{tpu_custom_call.1} parent=31 // pred_region
          %s196 = sand.u32 %s25, 1
          %s197 = scalar_lea.sflag [#allocation3], %s196
          %s198 = sand.u32 %s25, 1
          %s199 = smul.addr %s198, 8
          %s200 = scalar_lea.vmem [#allocation2], %s199
          %202 = vsyncadd %s197, 0
          %s203 = smul.addr %s15, 8
          %s204 = scalar_lea.hbm %s0, %s203
          %s206 = sshll.u32 %s204, 4
          %s207 = int_to_ptr.hbm [resolvable:$true] %s206
          %s208 = sshll.u32 %s200, 4
          %s209 = int_to_ptr.vmem [resolvable:$true] %s208
          %211 = dma.hbm_to_vmem [thread:$0]  %s207, 128, %s209, %s197
        $region36: #{tpu_custom_call.1} parent=31 // pred_fallthru
          _
      $region32: #{tpu_custom_call.1} parent=5 // pred_fallthru
        _
      %p212 = scmp.le.s32.totalorder 1, %s15
      %p213 = scmp.lt.s32.totalorder %s15, 3
      %p214 = pnand %p212, %p213
      %p215 = pneg %p214
      // Predicated region
      $region37: #{tpu_custom_call.1} parent=5 // pred_check
        _
      $region38: #{tpu_custom_call.1} parent=5 // pred_check_branch
        %217 = sbr.rel (%p214) target = $region40
      $region39: #{tpu_custom_call.1} parent=5 // pred_region
        %s218 = ssub.s32 %s15, 1
        %s219 = sand.u32 %s28, 1
        %s220 = scalar_lea.sflag [#allocation3], %s219
        %s221 = sand.u32 %s28, 1
        %s222 = smul.addr %s221, 8
        %s223 = scalar_lea.vmem [#allocation2], %s222
        // Predicated region
        $region41: #{tpu_custom_call.1} parent=39 // pred_check
          %p224 = pneg %p41
        $region42: #{tpu_custom_call.1} parent=39 // pred_check_branch
          %226 = sbr.rel (%p224) target = $region44
        $region43: #{tpu_custom_call.1} parent=39 // pred_region
          %228 = dma.done %s220, 128
        $region44: #{tpu_custom_call.1} parent=39 // pred_fallthru
          _
        // Predicated region
        $region45: #{tpu_custom_call.1} parent=39 // pred_check
          %p229 = pneg %p62
        $region46: #{tpu_custom_call.1} parent=39 // pred_check_branch
          %231 = sbr.rel (%p229) target = $region48
        $region47: #{tpu_custom_call.1} parent=39 // pred_region
          %233 = dma.done [#allocation5], 512
        $region48: #{tpu_custom_call.1} parent=39 // pred_fallthru
          _
        %s234 = sand.u32 %s28, 1
        %s235 = scalar_lea.sflag [#allocation3], %s234
        %s236 = sand.u32 %s28, 1
        %s237 = smul.addr %s236, 8
        %s238 = scalar_lea.vmem [#allocation2], %s237
        %p239 = pneg %p41
        %p240 = pneg %p38
        %p241 = pneg %p62
        %p242 = pneg %p59
        %p243 = pneg %p83
        %p244 = pneg %p80
        %p245 = pneg %p104
        %p246 = pneg %p101
        %p247 = pneg %p125
        %p248 = pneg %p122
        %p249 = pneg %p151
        %p250 = pneg %p148
        %p251 = scmp.lt.s32.totalorder %s20, 1
        %s252 = scalar_select %p251, %s20, 1
        %s253 = smul.addr %s252, 8
        %s254 = scalar_lea.vmem %s5, %s253
        %p255 = scmp.lt.s32.totalorder %s20, 1
        %s256 = scalar_select %p255, %s20, 1
        %s257 = smul.addr %s256, 8
        %s258 = scalar_lea.vmem %s5, %s257
        %v259 = vld [vmem:[%s4] sm:$0x7]
        %v260 = vld [vmem:[%s223] sm:$0xff]
        %v261 = vld [vmem:[#allocation4] sm:$0xff]
        %v262 = vld [vmem:[#allocation4 + $0x8] sm:$0xff]
        %v263 = vld [vmem:[#allocation4 + $0x10] sm:$0xff]
        %v264 = vld [vmem:[#allocation4 + $0x18] sm:$0xff]
        %v265 = vperm.slane %v259, 0
        %vm266 = vcmask 261120
        %v268 = vsel %vm266, %v260, 0
        %270 = vmatpush.msra.mxu0 0.0
        %271 = vmatpush.msra.mxu0 0.0
        %272 = vmatpush.msra.mxu0 0.0
        %273 = vmatpush.msra.mxu0 0.0
        %274 = vmatpush.msra.mxu0 0.0
        %275 = vmatpush.msra.mxu0 0.0
        %276 = vmatpush.msra.mxu0 0.0
        %277 = vmatpush.msra.mxu0 0.0
        %278 = vmatpush.msra.mxu0 0.0
        %279 = vmatpush.msra.mxu0 0.0
        %280 = vmatpush.msra.mxu0 0.0
        %281 = vmatpush.msra.mxu0 0.0
        %282 = vmatpush.msra.mxu0 %v264
        %283 = vmatpush.msra.mxu0 %v263
        %284 = vmatpush.msra.mxu0 %v262
        %285 = vmatpush.msra.mxu0 %v261
        %286 = vmatmul.f32.gmra.mxu0 %v268
        %v287 = vpop.f32.mrf.mxu0
        %v288 = vadd.f32 %v265, %v287
        %289 = vdwg.mxu0
        %v290 = vmax.f32 %v288, 0.0
        %v291 = vld [vmem:[%s2] sm:$0xff]
        %v292 = vld [vmem:[%s2 + $0x8] sm:$0xff]
        %v293 = vld [vmem:[%s2 + $0x10] sm:$0xff]
        %v294 = vld [vmem:[%s2 + $0x18] sm:$0xff]
        %v295 = vld [vmem:[%s2 + $0x20] sm:$0xff]
        %v296 = vld [vmem:[%s2 + $0x28] sm:$0xff]
        %v297 = vld [vmem:[%s2 + $0x30] sm:$0xff]
        %v298 = vld [vmem:[%s2 + $0x38] sm:$0xff]
        %v299 = vld [vmem:[%s2 + $0x40] sm:$0xff]
        %v300 = vld [vmem:[%s2 + $0x48] sm:$0xff]
        %v301 = vld [vmem:[%s2 + $0x50] sm:$0xff]
        %v302 = vld [vmem:[%s2 + $0x58] sm:$0xff]
        %v303 = vld [vmem:[%s2 + $0x60] sm:$0xff]
        %v304 = vld [vmem:[%s2 + $0x68] sm:$0xff]
        %v305 = vld [vmem:[%s2 + $0x70] sm:$0xff]
        %v306 = vld [vmem:[%s2 + $0x78] sm:$0xff]
        %v307 = vperm.slane %v259, 1
        %308 = vmatpush.msra.mxu0 %v306
        %309 = vmatpush.msra.mxu0 %v305
        %310 = vmatpush.msra.mxu0 %v304
        %311 = vmatpush.msra.mxu0 %v303
        %312 = vmatpush.msra.mxu0 %v302
        %313 = vmatpush.msra.mxu0 %v301
        %314 = vmatpush.msra.mxu0 %v300
        %315 = vmatpush.msra.mxu0 %v299
        %316 = vmatpush.msra.mxu0 %v298
        %317 = vmatpush.msra.mxu0 %v297
        %318 = vmatpush.msra.mxu0 %v296
        %319 = vmatpush.msra.mxu0 %v295
        %320 = vmatpush.msra.mxu0 %v294
        %321 = vmatpush.msra.mxu0 %v293
        %322 = vmatpush.msra.mxu0 %v292
        %323 = vmatpush.msra.mxu0 %v291
        %324 = vmatmul.f32.gmra.mxu0 %v290
        %v325 = vpop.f32.mrf.mxu0
        %v326 = vadd.f32 %v307, %v325
        %327 = vdwg.mxu0
        %v328 = vmax.f32 %v326, 0.0
        %v329 = vld [vmem:[%s3] sm:$0xff]
        %v330 = vld [vmem:[%s3 + $0x8] sm:$0xff]
        %v331 = vld [vmem:[%s3 + $0x10] sm:$0xff]
        %v332 = vld [vmem:[%s3 + $0x18] sm:$0xff]
        %v333 = vld [vmem:[%s3 + $0x20] sm:$0xff]
        %v334 = vld [vmem:[%s3 + $0x28] sm:$0xff]
        %v335 = vld [vmem:[%s3 + $0x30] sm:$0xff]
        %v336 = vld [vmem:[%s3 + $0x38] sm:$0xff]
        %v337 = vld [vmem:[%s3 + $0x40] sm:$0xff]
        %v338 = vld [vmem:[%s3 + $0x48] sm:$0xff]
        %v339 = vld [vmem:[%s3 + $0x50] sm:$0xff]
        %v340 = vld [vmem:[%s3 + $0x58] sm:$0xff]
        %v341 = vld [vmem:[%s3 + $0x60] sm:$0xff]
        %v342 = vld [vmem:[%s3 + $0x68] sm:$0xff]
        %v343 = vld [vmem:[%s3 + $0x70] sm:$0xff]
        %v344 = vld [vmem:[%s3 + $0x78] sm:$0xff]
        %v345 = vperm.slane %v259, 2
        %346 = vmatpush.msra.mxu0 %v344
        %347 = vmatpush.msra.mxu0 %v343
        %348 = vmatpush.msra.mxu0 %v342
        %349 = vmatpush.msra.mxu0 %v341
        %350 = vmatpush.msra.mxu0 %v340
        %351 = vmatpush.msra.mxu0 %v339
        %352 = vmatpush.msra.mxu0 %v338
        %353 = vmatpush.msra.mxu0 %v337
        %354 = vmatpush.msra.mxu0 %v336
        %355 = vmatpush.msra.mxu0 %v335
        %356 = vmatpush.msra.mxu0 %v334
        %357 = vmatpush.msra.mxu0 %v333
        %358 = vmatpush.msra.mxu0 %v332
        %359 = vmatpush.msra.mxu0 %v331
        %360 = vmatpush.msra.mxu0 %v330
        %361 = vmatpush.msra.mxu0 %v329
        %362 = vmatmul.f32.gmra.mxu0 %v328
        %v363 = vpop.f32.mrf.mxu0
        %v364 = vadd.f32 %v345, %v363
        %365 = vdwg.mxu0
        %vm366 = vcmask 64512
        %367 = vst.msk [vmem:[%s258] sm:$0xff] %vm366, %v364
        %p368 = scmp.lt.s32.totalorder %s20, 1
        %s369 = scalar_select %p368, %s20, 1
        %s370 = smul.addr %s369, 8
        %s371 = scalar_lea.vmem %s5, %s370
        // Predicated region
        $region49: #{tpu_custom_call.1} parent=39 // pred_check
          %p372 = pneg %p148
        $region50: #{tpu_custom_call.1} parent=39 // pred_check_branch
          %374 = sbr.rel (%p372) target = $region52
        $region51: #{tpu_custom_call.1} parent=39 // pred_region
          _
        $region52: #{tpu_custom_call.1} parent=39 // pred_fallthru
          _
      $region40: #{tpu_custom_call.1} parent=5 // pred_fallthru
        _
      %p375 = scmp.le.s32.totalorder 2, %s15
      // Predicated region
      $region53: #{tpu_custom_call.1} parent=5 // pred_check
        %p376 = pneg %p375
      $region54: #{tpu_custom_call.1} parent=5 // pred_check_branch
        %378 = sbr.rel (%p376) target = $region56
      $region55: #{tpu_custom_call.1} parent=5 // pred_region
        %s379 = ssub.s32 %s15, 2
        // Predicated region
        $region57: #{tpu_custom_call.1} parent=55 // pred_check
          %p380 = pneg %p154
        $region58: #{tpu_custom_call.1} parent=55 // pred_check_branch
          %382 = sbr.rel (%p380) target = $region60
        $region59: #{tpu_custom_call.1} parent=55 // pred_region
          %p383 = scmp.lt.s32.totalorder %s21, 1
          %s384 = scalar_select %p383, %s21, 1
          %s385 = smul.addr %s384, 8
          %s386 = scalar_lea.vmem %s5, %s385
        $region60: #{tpu_custom_call.1} parent=55 // pred_fallthru
          _
      $region56: #{tpu_custom_call.1} parent=5 // pred_fallthru
        _
    $region6: #{tpu_custom_call.1} parent=1 // loop_footer
      %s19 = sadd.s32 1, %s15
    $region7: #{tpu_custom_call.1} parent=1 // loop_footer_branch
      %14 = sbr.rel target = $region3
    $region8: #{tpu_custom_call.1} parent=1 // loop_exit
      _
    %387 = vsyncpa [#allocation3], 1
    %s388 = scalar_lea.sflag [#allocation3], 1
    %389 = vsyncpa %s388, 1
    %390 = vsyncpa [#allocation5], 1

</llo_original>
